<compile_context>
chip_gen: v6e
topology: v6e:2x2x1
jax: 0.10.0
libtpu: 0.0.40
codegen_flags: <defaults>
</compile_context>

<pallas_src>
import functools

import jax
import jax.numpy as jnp
from jax import lax
from jax.experimental import pallas as pl
from jax.experimental.pallas import tpu as pltpu

_EPS = 1e-8


def _ge2e_kernel(w_ref, tflag_ref, rows_ref, cols_ref, out_ref, *,
                 U, ne, nt, mxu_dtype):
    """One grid step: GE2E loss terms for a block of TQ phrases.

    w_ref:     (1, 1) f32 SMEM          similarity scale w (bias b cancels)
    tflag_ref: (B, 1) f32 VMEM          1.0 for test rows, 0.0 for enrol rows
    rows_ref:  (TQ, U, D) input dtype   this block's utterances (centroids)
    cols_ref:  (B, D)  input dtype      full utterance slab (resident)
    out_ref:   (1, TQ) f32              lse(neg) - lse(pos) per phrase
    """
    TQ = rows_ref.shape[0]
    B = cols_ref.shape[0]
    i = pl.program_id(0)
    f32 = jnp.float32
    eps2 = f32(_EPS * _EPS)

    # --- centroids of this block's TQ phrases: mean of the enrol rows --------
    # (sublane-masked sum along U; no mid-tile slice).
    rows = rows_ref[...].astype(f32)                                # (TQ, U, D)
    u_iota = lax.broadcasted_iota(jnp.int32, (1, U, 1), 1)
    cent = jnp.sum(jnp.where(u_iota < ne, rows, f32(0.0)), axis=1)  # (TQ, D)
    cent = cent * f32(1.0 / ne)
    ss_c = jnp.sum(cent * cent, axis=1, keepdims=True)              # (TQ, 1)
    cent = cent * lax.rsqrt(jnp.maximum(ss_c, eps2))                # F.normalize
    cent = cent * w_ref[0, 0]                                       # fold w in
    # Transpose only the SMALL operand so the slab hits the MXU untransposed.
    cent_t = jnp.transpose(cent).astype(mxu_dtype)                  # (D, TQ)

    # --- L2-normalise the resident slab (f32 accumulation for the squares;
    #     the normalising multiply stays in the input dtype). ------------------
    cols = cols_ref[...]                                            # (B, D)
    ss_t = jnp.sum(jnp.square(cols.astype(f32)), axis=1, keepdims=True)
    inv_t = lax.rsqrt(jnp.maximum(ss_t, eps2))                      # (B, 1) f32
    cols_n = (cols * inv_t.astype(cols.dtype)).astype(mxu_dtype)    # (B, D)

    # --- similarity block: every utterance vs this block's centroids ---------
    sim = lax.dot_general(cols_n, cent_t,
                          dimension_numbers=(((1,), (0,)), ((), ())),
                          preferred_element_type=f32)               # (B, TQ)

    # --- fused masked logsumexp over the utterance axis ----------------------
    # A single per-phrase max over all rows bounds both the positive and the
    # negative set (logits span at most 2*w) and cancels in lse(neg)-lse(pos),
    # as does the bias b.
    m = jnp.max(sim, axis=0, keepdims=True)                         # (1, TQ)
    e = jnp.exp(sim - m) * tflag_ref[...]                           # zero enrol rows
    # Positive rows of phrase p = i*TQ + q are [p*U + ne, p*U + U):
    # one subtract + one unsigned compare per element.
    r = lax.broadcasted_iota(jnp.int32, (B, TQ), 0)
    q = lax.broadcasted_iota(jnp.int32, (1, TQ), 1)
    lo = (i * TQ + q) * U + ne                                      # (1, TQ)
    is_pos = (r - lo).astype(jnp.uint32) < jnp.uint32(nt)           # (B, TQ)
    pos_sum = jnp.sum(jnp.where(is_pos, e, f32(0.0)), axis=0, keepdims=True)
    neg_sum = jnp.sum(jnp.where(is_pos, f32(0.0), e), axis=0, keepdims=True)
    out_ref[...] = jnp.log(neg_sum) - jnp.log(pos_sum)              # (1, TQ)


def ge2e_loss_pallas(embeddings, num_phrases, num_utterances_per_phrase, w, b,
                     *, phrase_block=128, matmul_dtype=jnp.bfloat16,
                     vmem_limit_bytes=48 * 1024 * 1024):
    """Pallas implementation of GE2ELoss.forward (mean loss over phrases)."""
    batch, dim = embeddings.shape
    X, U = num_phrases, num_utterances_per_phrase
    assert batch == X * U, "batch must equal num_phrases * num_utterances"
    assert U >= 2, "need >=2 utterances per phrase for the enrol/test split"
    assert X >= 2, "need >=2 phrases so every phrase has negative scores"
    ne = U // 2
    nt = U - ne
    del b  # b cancels exactly: lse(s + b) - lse(p + b) == lse(s) - lse(p)

    TQ = min(X, int(phrase_block))
    grid = (pl.cdiv(X, TQ),)

    # Metadata-only 3-D view for the pipelined per-block (centroid) input; the
    # column slab is passed in its native 2-D layout so no relayout is needed.
    emb3 = embeddings.reshape(X, U, dim)
    w2 = jnp.reshape(jnp.asarray(w, jnp.float32), (1, 1))
    # 1.0 for test utterances, 0.0 for enrolment utterances (tiny, resident).
    tflag = (jnp.arange(batch, dtype=jnp.int32) % U >= ne)
    tflag = tflag.astype(jnp.float32).reshape(batch, 1)

    kernel = functools.partial(_ge2e_kernel, U=U, ne=ne, nt=nt,
                               mxu_dtype=matmul_dtype)
    out = pl.pallas_call(
        kernel,
        out_shape=jax.ShapeDtypeStruct((1, X), jnp.float32),
        grid=grid,
        in_specs=[
            pl.BlockSpec((1, 1), lambda i: (0, 0),
                         memory_space=pltpu.MemorySpace.SMEM),      # w
            pl.BlockSpec((batch, 1), lambda i: (0, 0)),             # test flags
            pl.BlockSpec((TQ, U, dim), lambda i: (i, 0, 0)),        # row block
            pl.BlockSpec((batch, dim), lambda i: (0, 0)),           # full slab
        ],
        out_specs=pl.BlockSpec((1, TQ), lambda i: (0, i)),          # lane-dense
        compiler_params=pltpu.CompilerParams(
            dimension_semantics=("parallel",),   # v7x: split blocks across TCs
            vmem_limit_bytes=int(vmem_limit_bytes),
        ),
    )(w2, tflag, emb3, embeddings)
    return jnp.mean(out)


def ge2e_loss_ref(embeddings, num_phrases, num_utterances_per_phrase, w, b):
    """Pure-JAX reference mirroring the PyTorch module (for verification)."""
    batch, dim = embeddings.shape
    ne = num_utterances_per_phrase // 2
    nt = num_utterances_per_phrase - ne
    emb_r = embeddings.reshape(num_phrases, num_utterances_per_phrase, dim)
    enroll = emb_r[:, :ne, :]
    test = emb_r[:, ne:, :].reshape(-1, dim)

    cent = enroll.mean(axis=1)
    cent = cent / jnp.maximum(jnp.linalg.norm(cent, axis=1, keepdims=True), _EPS)
    test_n = test / jnp.maximum(jnp.linalg.norm(test, axis=1, keepdims=True), _EPS)
    sim = w * (cent @ test_n.T) + b

    total = 0.0
    for i in range(num_phrases):
        s, e = i * nt, (i + 1) * nt
        pos = sim[i, s:e]
        neg = jnp.concatenate([sim[i, :s], sim[i, e:]])
        total += jax.scipy.special.logsumexp(neg) - jax.scipy.special.logsumexp(pos)
    return total / num_phrases


if __name__ == "__main__":
    num_phrases = 4
    num_utterances = 8
    embedding_dim = 32

    key = jax.random.PRNGKey(0)
    embeddings = jax.random.normal(
        key, (num_phrases * num_utterances, embedding_dim), dtype=jnp.float32
    )

    # Deterministic parameter init matching the module's __init__.
    init_w = jnp.float32(10.0)
    init_b = jnp.float32(-5.0)

    # Exact-precision path (f32 MXU operands) checked tightly vs the reference.
    loss = ge2e_loss_pallas(embeddings, num_phrases, num_utterances,
                            init_w, init_b, matmul_dtype=jnp.float32)
    loss = jax.block_until_ready(loss)
    loss_ref = ge2e_loss_ref(embeddings, num_phrases, num_utterances,
                             init_w, init_b)
    assert jnp.allclose(loss, loss_ref, atol=1e-4, rtol=1e-4), (loss, loss_ref)

    # Default production path: bf16 inputs, bf16 MXU operands (f32 accumulate).
    emb_bf16 = embeddings.astype(jnp.bfloat16)
    loss_bf = ge2e_loss_pallas(emb_bf16, num_phrases, num_utterances,
                               init_w, init_b)
    loss_bf = jax.block_until_ready(loss_bf)
    loss_bf_ref = ge2e_loss_ref(emb_bf16.astype(jnp.float32), num_phrases,
                                num_utterances, init_w, init_b)
    assert jnp.allclose(loss_bf, loss_bf_ref, atol=1e-1, rtol=1e-1), (
        loss_bf, loss_bf_ref)

    print("KERNEL_OK")
</pallas_src>

<mosaic_0001>
module attributes {stable_mosaic.version = 11 : i64} {
  func.func @_ge2e_kernel(%arg0: i32, %arg1: memref<1x1xf32, #tpu.memory_space<smem>>, %arg2: memref<32x1xf32, #tpu.memory_space<vmem>>, %arg3: memref<4x8x32xf32, #tpu.memory_space<vmem>>, %arg4: memref<32x32xf32, #tpu.memory_space<vmem>>, %arg5: memref<1x4xf32, #tpu.memory_space<vmem>>) attributes {dimension_semantics = [#tpu.dimension_semantics<parallel>], iteration_bounds = array<i64: 1>, scalar_prefetch = 0 : i64, scratch_operands = 0 : i64, tpu.core_type = #tpu.core_type<tc>, window_params = [{transform_indices = @transform_0, window_bounds = array<i64: 1, 1>}, {pipeline_mode = #tpu.pipeline_mode<synchronous>, transform_indices = @transform_1, window_bounds = array<i64: 32, 1>}, {transform_indices = @transform_2, window_bounds = array<i64: 4, 8, 32>}, {pipeline_mode = #tpu.pipeline_mode<synchronous>, transform_indices = @transform_3, window_bounds = array<i64: 32, 32>}, {transform_indices = @transform_4, window_bounds = array<i64: 1, 4>}]} {
    %c0 = arith.constant 0 : index
    %c0_0 = arith.constant 0 : index
    %c0_1 = arith.constant 0 : index
    %0 = vector.load %arg3[%c0, %c0_0, %c0_1] : memref<4x8x32xf32, #tpu.memory_space<vmem>>, vector<4x8x32xf32>
    %1 = tpu.iota {dimensions = array<i32: 1>} : vector<1x8x1xi32>
    %c4_i32 = arith.constant 4 : i32
    %2 = vector.broadcast %c4_i32 : i32 to vector<1x8x1xi32>
    %3 = arith.cmpi slt, %1, %2 : vector<1x8x1xi32>
    %cst = arith.constant 0.000000e+00 : f32
    %4 = vector.shape_cast %3 : vector<1x8x1xi1> to vector<1x8x1xi1>
    %5 = vector.broadcast %4 : vector<1x8x1xi1> to vector<4x8x32xi1>
    %6 = vector.broadcast %cst : f32 to vector<4x8x32xf32>
    %7 = arith.select %5, %0, %6 : vector<4x8x32xi1>, vector<4x8x32xf32>
    %cst_2 = arith.constant dense<0.000000e+00> : vector<4x32xf32>
    %8 = vector.multi_reduction <add>, %7, %cst_2 [1] : vector<4x8x32xf32> to vector<4x32xf32>
    %cst_3 = arith.constant 2.500000e-01 : f32
    %9 = vector.broadcast %cst_3 : f32 to vector<4x32xf32>
    %10 = arith.mulf %8, %9 : vector<4x32xf32>
    %11 = arith.mulf %10, %10 : vector<4x32xf32>
    %cst_4 = arith.constant dense<0.000000e+00> : vector<4xf32>
    %12 = vector.multi_reduction <add>, %11, %cst_4 [1] : vector<4x32xf32> to vector<4xf32>
    %13 = vector.shape_cast %12 : vector<4xf32> to vector<4x1xf32>
    %cst_5 = arith.constant 1.000000e-16 : f32
    %14 = vector.broadcast %cst_5 : f32 to vector<4x1xf32>
    %15 = arith.maximumf %13, %14 : vector<4x1xf32>
    %16 = math.rsqrt %15 : vector<4x1xf32>
    %17 = vector.broadcast %16 : vector<4x1xf32> to vector<4x32xf32>
    %18 = arith.mulf %10, %17 : vector<4x32xf32>
    %c0_6 = arith.constant 0 : index
    %c0_7 = arith.constant 0 : index
    %19 = memref.load %arg1[%c0_6, %c0_7] : memref<1x1xf32, #tpu.memory_space<smem>>
    %20 = vector.broadcast %19 : f32 to vector<4x32xf32>
    %21 = arith.mulf %18, %20 : vector<4x32xf32>
    %22 = tpu.transpose %21, [1, 0] : vector<4x32xf32> -> vector<32x4xf32>
    %c0_8 = arith.constant 0 : index
    %c0_9 = arith.constant 0 : index
    %23 = vector.load %arg4[%c0_8, %c0_9] : memref<32x32xf32, #tpu.memory_space<vmem>>, vector<32x32xf32>
    %24 = arith.mulf %23, %23 : vector<32x32xf32>
    %cst_10 = arith.constant dense<0.000000e+00> : vector<32xf32>
    %25 = vector.multi_reduction <add>, %24, %cst_10 [1] : vector<32x32xf32> to vector<32xf32>
    %26 = vector.shape_cast %25 : vector<32xf32> to vector<32x1xf32>
    %cst_11 = arith.constant 1.000000e-16 : f32
    %27 = vector.broadcast %cst_11 : f32 to vector<32x1xf32>
    %28 = arith.maximumf %26, %27 : vector<32x1xf32>
    %29 = math.rsqrt %28 : vector<32x1xf32>
    %30 = vector.broadcast %29 : vector<32x1xf32> to vector<32x32xf32>
    %31 = arith.mulf %23, %30 : vector<32x32xf32>
    %cst_12 = arith.constant dense<0.000000e+00> : vector<32x4xf32>
    %32 = tpu.matmul %31, %22, %cst_12 {dimension_numbers = #tpu.dot_dimension_numbers<[1], [0], [0], [1], [0, 0, 1, 1], [], []>} : vector<32x32xf32>, vector<32x4xf32>, vector<32x4xf32> -> vector<32x4xf32>
    %cst_13 = arith.constant dense<0xFF800000> : vector<4xf32>
    %33 = vector.multi_reduction <maximumf>, %32, %cst_13 [0] : vector<32x4xf32> to vector<4xf32>
    %34 = vector.shape_cast %33 : vector<4xf32> to vector<1x4xf32>
    %35 = vector.broadcast %34 : vector<1x4xf32> to vector<32x4xf32>
    %36 = arith.subf %32, %35 : vector<32x4xf32>
    %37 = math.exp %36 : vector<32x4xf32>
    %c0_14 = arith.constant 0 : index
    %c0_15 = arith.constant 0 : index
    %38 = vector.load %arg2[%c0_14, %c0_15] : memref<32x1xf32, #tpu.memory_space<vmem>>, vector<32x1xf32>
    %39 = vector.broadcast %38 : vector<32x1xf32> to vector<32x4xf32>
    %40 = arith.mulf %37, %39 : vector<32x4xf32>
    %41 = tpu.iota {dimensions = array<i32: 0>} : vector<32x4xi32>
    %42 = tpu.iota {dimensions = array<i32: 1>} : vector<1x4xi32>
    %c4_i32_16 = arith.constant 4 : i32
    %43 = arith.muli %arg0, %c4_i32_16 : i32
    %44 = vector.broadcast %43 : i32 to vector<1x4xi32>
    %45 = arith.addi %44, %42 : vector<1x4xi32>
    %c8_i32 = arith.constant 8 : i32
    %46 = vector.broadcast %c8_i32 : i32 to vector<1x4xi32>
    %47 = arith.muli %45, %46 : vector<1x4xi32>
    %c4_i32_17 = arith.constant 4 : i32
    %48 = vector.broadcast %c4_i32_17 : i32 to vector<1x4xi32>
    %49 = arith.addi %47, %48 : vector<1x4xi32>
    %50 = vector.broadcast %49 : vector<1x4xi32> to vector<32x4xi32>
    %51 = arith.subi %41, %50 : vector<32x4xi32>
    %c4_i32_18 = arith.constant 4 : i32
    %52 = vector.broadcast %c4_i32_18 : i32 to vector<32x4xi32>
    %53 = arith.cmpi ult, %51, %52 : vector<32x4xi32>
    %cst_19 = arith.constant 0.000000e+00 : f32
    %54 = vector.broadcast %cst_19 : f32 to vector<32x4xf32>
    %55 = arith.select %53, %40, %54 : vector<32x4xi1>, vector<32x4xf32>
    %cst_20 = arith.constant dense<0.000000e+00> : vector<4xf32>
    %56 = vector.multi_reduction <add>, %55, %cst_20 [0] : vector<32x4xf32> to vector<4xf32>
    %57 = vector.shape_cast %56 : vector<4xf32> to vector<1x4xf32>
    %cst_21 = arith.constant 0.000000e+00 : f32
    %58 = vector.broadcast %cst_21 : f32 to vector<32x4xf32>
    %59 = arith.select %53, %58, %40 : vector<32x4xi1>, vector<32x4xf32>
    %cst_22 = arith.constant dense<0.000000e+00> : vector<4xf32>
    %60 = vector.multi_reduction <add>, %59, %cst_22 [0] : vector<32x4xf32> to vector<4xf32>
    %61 = vector.shape_cast %60 : vector<4xf32> to vector<1x4xf32>
    %62 = math.log %61 : vector<1x4xf32>
    %63 = math.log %57 : vector<1x4xf32>
    %64 = arith.subf %62, %63 : vector<1x4xf32>
    %c0_23 = arith.constant 0 : index
    %c0_24 = arith.constant 0 : index
    %65 = vector.load %arg5[%c0_23, %c0_24] : memref<1x4xf32, #tpu.memory_space<vmem>>, vector<1x4xf32>
    tpu.vector_store %arg5[%c0_23, %c0_24], %64 {strides = array<i32>} : memref<1x4xf32, #tpu.memory_space<vmem>>, vector<1x4xf32>,
    return
  }
  func.func @transform_0(%arg0: i32) -> (i32, i32) {
    %c0_i32 = arith.constant 0 : i32
    %c0_i32_0 = arith.constant 0 : i32
    %c0_i32_1 = arith.constant 0 : i32
    return %c0_i32, %c0_i32_0 : i32, i32
  }
  func.func @transform_1(%arg0: i32) -> (i32, i32) {
    %c0_i32 = arith.constant 0 : i32
    %c0_i32_0 = arith.constant 0 : i32
    %c0_i32_1 = arith.constant 0 : i32
    return %c0_i32, %c0_i32_0 : i32, i32
  }
  func.func @transform_2(%arg0: i32) -> (i32, i32, i32) {
    %c0_i32 = arith.constant 0 : i32
    %c0_i32_0 = arith.constant 0 : i32
    %c0_i32_1 = arith.constant 0 : i32
    return %arg0, %c0_i32, %c0_i32_0 : i32, i32, i32
  }
  func.func @transform_3(%arg0: i32) -> (i32, i32) {
    %c0_i32 = arith.constant 0 : i32
    %c0_i32_0 = arith.constant 0 : i32
    %c0_i32_1 = arith.constant 0 : i32
    return %c0_i32, %c0_i32_0 : i32, i32
  }
  func.func @transform_4(%arg0: i32) -> (i32, i32) {
    %c0_i32 = arith.constant 0 : i32
    %c0_i32_0 = arith.constant 0 : i32
    return %c0_i32, %arg0 : i32, i32
  }
}

</mosaic_0001>

<llo_original>
// kernel: tpu_custom_call.1
$region0: #{tpu_custom_call.1}
  #allocation0 [shape = 'u32[]', space=smem, size = 0x4, offset = 0x4, fixed_abs, tag = 'smem constant byte address 0x4 - core index']
  #allocation1 [shape = 'u32[144,128]{1,0:T(1,128)}', space=vmem, size = 0x12000, scoped, tag = 'internal scratch']
  #allocation2 [shape = 'f32[1,1]{1,0:T(1,128)S(6)}', space=smem, size = 0x200, scoped, tag = 'scoped memory for tpu_custom_call.1']
  %s0 = inlined_call_operand.<no memory space> [shape: f32[1,1], index: 0, kind: input, shape index: {}]
  %s1 = inlined_call_operand.vmem [shape: f32[32,1], index: 1, kind: input, shape index: {}]
  %s2 = inlined_call_operand.vmem [shape: f32[4,8,32], index: 2, kind: input, shape index: {}]
  %s3 = inlined_call_operand.hbm [shape: f32[32,32], index: 3, kind: input, shape index: {}]
  %s4 = inlined_call_operand.hbm [shape: f32[1,4], index: 4, kind: output, shape index: {}]
  %s5 = sld [smem:[#allocation0]]
  $region30: #{tpu_custom_call.1} parent=0
    _
  %s7 = ssub.s32 1, %s5
  %s8 = scalar_select 0, %s7, %s5
  %9 = sst [smem:[#allocation2]] %s0
  $region1: #{tpu_custom_call.1} parent=0
    #allocation3 [shape = 'u8[16384]{0}', space=vmem, size = 0x4000, scoped, tag = 'input window, operand 3, single buffered']
    #allocation4 [shape = 's32[1]{0}', space=sflag, size = 0x4, scoped, tag = 'scoped memory for tpu_custom_call.1']
    #allocation5 [shape = 's32[1]{0}', space=sflag, size = 0x4, scoped, tag = 'scoped memory for tpu_custom_call.1']
    #allocation6 [shape = 'u8[512]{0}', space=vmem, size = 0x400, scoped, tag = 'output window, operand 0, single buffered']
    %10 = vsyncpa [#allocation4], 0
    %11 = vsyncpa [#allocation5], 0
    // Predicated region
    $region2: #{tpu_custom_call.1} parent=1 // pred_check
      _
    $region3: #{tpu_custom_call.1} parent=1 // pred_check_branch
      %13 = sbr.rel (0) target = $region5
    $region4: #{tpu_custom_call.1} parent=1 // pred_region
      _
    $region5: #{tpu_custom_call.1} parent=1 // pred_fallthru
      _
    // Predicated region
    $region6: #{tpu_custom_call.1} parent=1 // pred_check
      _
    $region7: #{tpu_custom_call.1} parent=1 // pred_check_branch
      %15 = sbr.rel (0) target = $region9
    $region8: #{tpu_custom_call.1} parent=1 // pred_region
      _
    $region9: #{tpu_custom_call.1} parent=1 // pred_fallthru
      _
    // Predicated region
    $region10: #{tpu_custom_call.1} parent=1 // pred_check
      _
    $region11: #{tpu_custom_call.1} parent=1 // pred_check_branch
      %17 = sbr.rel (0) target = $region13
    $region12: #{tpu_custom_call.1} parent=1 // pred_region
      _
    $region13: #{tpu_custom_call.1} parent=1 // pred_fallthru
      _
    // Predicated region
    $region14: #{tpu_custom_call.1} parent=1 // pred_check
      _
    $region15: #{tpu_custom_call.1} parent=1 // pred_check_branch
      %19 = sbr.rel (0) target = $region17
    $region16: #{tpu_custom_call.1} parent=1 // pred_region
      %s21 = ssub.s32 512, 512
      %22 = vsyncadd [#allocation4], %s21
      %s23 = sshll.u32 [#allocation3], 4
      %s24 = int_to_ptr.vmem [resolvable:$true] %s23
      %29 = dma.hbm_to_vmem [thread:$0]  %s3, 512, %s24, [#allocation4], 128, 128, 8
    $region17: #{tpu_custom_call.1} parent=1 // pred_fallthru
      _
    // Predicated region
    $region18: #{tpu_custom_call.1} parent=1 // pred_check
      _
    $region19: #{tpu_custom_call.1} parent=1 // pred_check_branch
      %31 = sbr.rel (0) target = $region21
    $region20: #{tpu_custom_call.1} parent=1 // pred_region
      %32 = dma.done [#allocation4], 512
    $region21: #{tpu_custom_call.1} parent=1 // pred_fallthru
      _
    %v33 = vld [vmem:[%s2] sm:$0xff]
    %v34 = vld [vmem:[%s2 + $0x8] sm:$0xff]
    %v35 = vld [vmem:[%s2 + $0x10] sm:$0xff]
    %v36 = vld [vmem:[%s2 + $0x18] sm:$0xff]
    %v37 = vlaneseq
    %v38 = vshrl.u32 %v37, 7
    %vm39 = vcmp.lt.s32.totalorder %v38, 4
    %v40 = vsel %vm39, 1, 0
    %vm41 = vcmp.eq.s32.totalorder %v40, 1
    %v42 = vsel %vm41, %v33, 0.0
    %v43 = vsel %vm41, %v34, 0.0
    %v44 = vsel %vm41, %v35, 0.0
    %v45 = vsel %vm41, %v36, 0.0
    %vm46 = vcmask 261120
    %v47 = vsel %vm46, %v42, 0.0
    %v48 = vrot.slane %v47, 4
    %v49 = vadd.f32 %v47, %v48
    %v50 = vrot.slane %v49, 2
    %v51 = vadd.f32 %v49, %v50
    %v52 = vrot.slane %v51, 1
    %v53 = vadd.f32 %v51, %v52
    %v54 = vsel %vm46, %v43, 0.0
    %v55 = vrot.slane %v54, 4
    %v56 = vadd.f32 %v54, %v55
    %v57 = vrot.slane %v56, 2
    %v58 = vadd.f32 %v56, %v57
    %v59 = vrot.slane %v58, 1
    %v60 = vadd.f32 %v58, %v59
    %v61 = vsel %vm46, %v44, 0.0
    %v62 = vrot.slane %v61, 4
    %v63 = vadd.f32 %v61, %v62
    %v64 = vrot.slane %v63, 2
    %v65 = vadd.f32 %v63, %v64
    %v66 = vrot.slane %v65, 1
    %v67 = vadd.f32 %v65, %v66
    %v68 = vsel %vm46, %v45, 0.0
    %v69 = vrot.slane %v68, 4
    %v70 = vadd.f32 %v68, %v69
    %v71 = vrot.slane %v70, 2
    %v72 = vadd.f32 %v70, %v71
    %v73 = vrot.slane %v72, 1
    %v74 = vadd.f32 %v72, %v73
    %v75 = vmul.f32 %v53, 0.25
    %v76 = vmul.f32 %v60, 0.25
    %v77 = vmul.f32 %v67, 0.25
    %v78 = vmul.f32 %v74, 0.25
    %v79 = vmul.f32 %v75, %v75
    %v80 = vmul.f32 %v76, %v76
    %v81 = vmul.f32 %v77, %v77
    %v82 = vmul.f32 %v78, %v78
    %vm87 = vcmask 1041409
    %v88 = vsel %vm87, %v80, %v79
    %vm89 = vcmask 1042434
    %v90 = vsel %vm89, %v81, %v88
    %vm91 = vcmask 1043459
    %v92 = vsel %vm91, %v82, %v90
    %vm94 = vcmask 257024
    %v95 = vsel %vm94, %v92, 0.0
    %96 = vadd.xlane.f32.xlu0 %v95
    %v97 = vpop.xlane.xlu0 %96
    %v98 = vmax.f32 %v97, 1e-16
    %v99 = vrsqrt.pop %v98
    %v101 = vrot.slane %v99, 1
    %v102 = vrot.slane %v99, 2
    %v103 = vrot.slane %v99, 3
    %v108 = vmul.f32 %v75, %v99
    %v109 = vmul.f32 %v76, %v101
    %v110 = vmul.f32 %v77, %v102
    %v111 = vmul.f32 %v78, %v103
    %s112 = sld [smem:[#allocation2]]
    %v113 = vstv %s112
    %v114 = vmul.f32 %v108, %v113
    %v115 = vmul.f32 %v109, %v113
    %v116 = vmul.f32 %v110, %v113
    %v117 = vmul.f32 %v111, %v113
    %v118 = vld [vmem:[#allocation3] sm:$0xff]
    %v119 = vld [vmem:[#allocation3 + $0x8] sm:$0xff]
    %v120 = vld [vmem:[#allocation3 + $0x10] sm:$0xff]
    %v121 = vld [vmem:[#allocation3 + $0x18] sm:$0xff]
    %v122 = vmul.f32 %v118, %v118
    %v123 = vmul.f32 %v119, %v119
    %v124 = vmul.f32 %v120, %v120
    %v125 = vmul.f32 %v121, %v121
    %v126 = vsel %vm46, %v122, 0.0
    %127 = vadd.xlane.f32.xlu0 %v126
    %v128 = vpop.xlane.xlu0 %127
    %v129 = vsel %vm46, %v123, 0.0
    %130 = vadd.xlane.f32.xlu0 %v129
    %v131 = vpop.xlane.xlu0 %130
    %v132 = vsel %vm46, %v124, 0.0
    %133 = vadd.xlane.f32.xlu0 %v132
    %v134 = vpop.xlane.xlu0 %133
    %v135 = vsel %vm46, %v125, 0.0
    %136 = vadd.xlane.f32.xlu0 %v135
    %v137 = vpop.xlane.xlu0 %136
    %v138 = vmax.f32 %v128, 1e-16
    %v139 = vmax.f32 %v131, 1e-16
    %v140 = vmax.f32 %v134, 1e-16
    %v141 = vmax.f32 %v137, 1e-16
    %v142 = vrsqrt.pop %v138
    %v143 = vrsqrt.pop %v139
    %v144 = vrsqrt.pop %v140
    %v145 = vrsqrt.pop %v141
    %v146 = vmul.f32 %v118, %v142
    %v147 = vmul.f32 %v119, %v143
    %v148 = vmul.f32 %v120, %v144
    %v149 = vmul.f32 %v121, %v145
    %v154 = vrot.slane %v115, 7
    %v155 = vsel %vm87, %v154, %v114
    %v156 = vrot.slane %v116, 6
    %v157 = vsel %vm89, %v156, %v155
    %v158 = vrot.slane %v117, 5
    %v159 = vsel %vm91, %v158, %v157
    %v161 = vsel %vm46, %v146, 0
    %v164 = vsel %vm46, %v147, 0
    %v167 = vsel %vm46, %v148, 0
    %v170 = vsel %vm46, %v149, 0
    %v172 = vsel %vm46, %v159, 0
    %174 = vmatprep.subr.mxu0 0.0
    %175 = vmatpush1.xpose.msra.mxu0 0.0
    %176 = vmatprep.subr.mxu0 0.0
    %177 = vmatpush1.xpose.msra.mxu0 0.0
    %178 = vmatprep.subr.mxu0 0.0
    %179 = vmatpush1.xpose.msra.mxu0 0.0
    %180 = vmatprep.subr.mxu0 0.0
    %181 = vmatpush1.xpose.msra.mxu0 0.0
    %182 = vmatprep.subr.mxu0 0.0
    %183 = vmatpush1.xpose.msra.mxu0 0.0
    %184 = vmatprep.subr.mxu0 0.0
    %185 = vmatpush1.xpose.msra.mxu0 0.0
    %186 = vmatprep.subr.mxu0 0.0
    %187 = vmatpush1.xpose.msra.mxu0 0.0
    %188 = vmatprep.subr.mxu0 0.0
    %189 = vmatpush1.xpose.msra.mxu0 0.0
    %190 = vmatprep.subr.mxu0 0.0
    %191 = vmatpush1.xpose.msra.mxu0 0.0
    %192 = vmatprep.subr.mxu0 0.0
    %193 = vmatpush1.xpose.msra.mxu0 0.0
    %194 = vmatprep.subr.mxu0 0.0
    %195 = vmatpush1.xpose.msra.mxu0 0.0
    %196 = vmatprep.subr.mxu0 0.0
    %197 = vmatpush1.xpose.msra.mxu0 0.0
    %198 = vmatprep.subr.mxu0 0.0
    %199 = vmatpush1.xpose.msra.mxu0 0.0
    %200 = vmatprep.subr.mxu0 0.0
    %201 = vmatpush1.xpose.msra.mxu0 0.0
    %202 = vmatprep.subr.mxu0 0.0
    %203 = vmatpush1.xpose.msra.mxu0 0.0
    %204 = vmatprep.subr.mxu0 0.0
    %205 = vmatpush1.xpose.msra.mxu0 %v172
    %206 = vmatprep.subr.mxu0 0.0
    %207 = vmatpush2.xpose.msra.mxu0 0.0
    %208 = vmatprep.subr.mxu0 0.0
    %209 = vmatpush2.xpose.msra.mxu0 0.0
    %210 = vmatprep.subr.mxu0 0.0
    %211 = vmatpush2.xpose.msra.mxu0 0.0
    %212 = vmatprep.subr.mxu0 0.0
    %213 = vmatpush2.xpose.msra.mxu0 0.0
    %214 = vmatprep.subr.mxu0 0.0
    %215 = vmatpush2.xpose.msra.mxu0 0.0
    %216 = vmatprep.subr.mxu0 0.0
    %217 = vmatpush2.xpose.msra.mxu0 0.0
    %218 = vmatprep.subr.mxu0 0.0
    %219 = vmatpush2.xpose.msra.mxu0 0.0
    %220 = vmatprep.subr.mxu0 0.0
    %221 = vmatpush2.xpose.msra.mxu0 0.0
    %222 = vmatprep.subr.mxu0 0.0
    %223 = vmatpush2.xpose.msra.mxu0 0.0
    %224 = vmatprep.subr.mxu0 0.0
    %225 = vmatpush2.xpose.msra.mxu0 0.0
    %226 = vmatprep.subr.mxu0 0.0
    %227 = vmatpush2.xpose.msra.mxu0 0.0
    %228 = vmatprep.subr.mxu0 0.0
    %229 = vmatpush2.xpose.msra.mxu0 0.0
    %230 = vmatprep.subr.mxu0 0.0
    %231 = vmatpush2.xpose.msra.mxu0 0.0
    %232 = vmatprep.subr.mxu0 0.0
    %233 = vmatpush2.xpose.msra.mxu0 0.0
    %234 = vmatprep.subr.mxu0 0.0
    %235 = vmatpush2.xpose.msra.mxu0 0.0
    %236 = vmatprep.subr.mxu0 0.0
    %237 = vmatpush2.xpose.msra.mxu0 0.0
    %238 = vmatprep.mubr.f32.mxu0 0.0
    %239 = vmatmul.mubr.f32.gmra.mxu0 %v161
    %v240 = vpop.f32.mrf.mxu0
    %v241 = vadd.f32 0.0, %v240
    %v242 = vpop.f32.mrf.mxu0
    %243 = vmatprep.mubr.f32.mxu0 0.0
    %244 = vmatmul.mubr.f32.gmra.mxu0 %v164
    %v245 = vpop.f32.mrf.mxu0
    %v246 = vadd.f32 0.0, %v245
    %v247 = vpop.f32.mrf.mxu0
    %248 = vmatprep.mubr.f32.mxu0 0.0
    %249 = vmatmul.mubr.f32.gmra.mxu0 %v167
    %v250 = vpop.f32.mrf.mxu0
    %v251 = vadd.f32 0.0, %v250
    %v252 = vpop.f32.mrf.mxu0
    %253 = vmatprep.mubr.f32.mxu0 0.0
    %254 = vmatmul.mubr.f32.gmra.mxu0 %v170
    %v255 = vpop.f32.mrf.mxu0
    %v256 = vadd.f32 0.0, %v255
    %v257 = vpop.f32.mrf.mxu0
    %258 = vdwg.mxu0
    %vm259 = vcmask 31744
    %v260 = vsel %vm259, %v241, -inf
    %v261 = vsel %vm259, %v246, -inf
    %v262 = vsel %vm259, %v251, -inf
    %v263 = vsel %vm259, %v256, -inf
    %v264 = vmax.f32 %v260, %v261
    %v265 = vmax.f32 %v262, %v263
    %v266 = vmax.f32 %v264, %v265
    %v267 = vrot.slane %v266, 4
    %v268 = vmax.f32 %v266, %v267
    %v269 = vrot.slane %v268, 2
    %v270 = vmax.f32 %v268, %v269
    %v271 = vrot.slane %v270, 1
    %v272 = vmax.f32 %v270, %v271
    %v273 = vsub.f32 %v241, %v272
    %v274 = vsub.f32 %v246, %v272
    %v275 = vsub.f32 %v251, %v272
    %v276 = vsub.f32 %v256, %v272
    %v277 = vmul.f32 %v273, 1.442695
    %v278 = vpow.pop %v277
    %v279 = vmul.f32 %v274, 1.442695
    %v280 = vpow.pop %v279
    %v281 = vmul.f32 %v275, 1.442695
    %v282 = vpow.pop %v281
    %v283 = vmul.f32 %v276, 1.442695
    %v284 = vpow.pop %v283
    %v285 = vld [vmem:[%s1] sm:$0xff]
    %v286 = vld [vmem:[%s1 + $0x8] sm:$0xff]
    %v287 = vld [vmem:[%s1 + $0x10] sm:$0xff]
    %v288 = vld [vmem:[%s1 + $0x18] sm:$0xff]
    %290 = vset.pattern.permute.xlu0 0
    %291 = vperm.xlu0 %290, %v285
    %v292 = vpop.permute.xlu0 %291
    %295 = vset.pattern.permute.xlu0 0
    %296 = vperm.xlu0 %295, %v286
    %v297 = vpop.permute.xlu0 %296
    %300 = vset.pattern.permute.xlu0 0
    %301 = vperm.xlu0 %300, %v287
    %v302 = vpop.permute.xlu0 %301
    %305 = vset.pattern.permute.xlu0 0
    %306 = vperm.xlu0 %305, %v288
    %v307 = vpop.permute.xlu0 %306
    %v309 = vmul.f32 %v278, %v292
    %v310 = vmul.f32 %v280, %v297
    %v311 = vmul.f32 %v282, %v302
    %v312 = vmul.f32 %v284, %v307
    %v313 = vadd.s32 %v38, 8
    %v314 = vadd.s32 %v38, 16
    %v315 = vadd.s32 %v38, 24
    %v316 = vlaneseq
    %v317 = vand.u32 %v316, 127
    %s318 = smul.u32 0, 4
    %v319 = vstv %s318
    %v320 = vadd.s32 %v319, %v317
    %v321 = vmul.u32 %v320, 8
    %v322 = vadd.s32 %v321, 4
    %v323 = vsub.s32 %v38, %v322
    %v324 = vsub.s32 %v313, %v322
    %v325 = vsub.s32 %v314, %v322
    %v326 = vsub.s32 %v315, %v322
    %vm327 = vcmp.lt.u32.totalorder %v323, 4
    %vm328 = vcmp.lt.u32.totalorder %v324, 4
    %vm329 = vcmp.lt.u32.totalorder %v325, 4
    %vm330 = vcmp.lt.u32.totalorder %v326, 4
    %v331 = vsel %vm327, %v309, 0.0
    %v332 = vsel %vm328, %v310, 0.0
    %v333 = vsel %vm329, %v311, 0.0
    %v334 = vsel %vm330, %v312, 0.0
    %v335 = vsel %vm259, %v331, 0.0
    %v336 = vsel %vm259, %v332, 0.0
    %v337 = vadd.f32 %v335, %v336
    %v338 = vsel %vm259, %v333, 0.0
    %v339 = vadd.f32 %v337, %v338
    %v340 = vsel %vm259, %v334, 0.0
    %v341 = vadd.f32 %v339, %v340
    %v342 = vrot.slane %v341, 4
    %v343 = vadd.f32 %v341, %v342
    %v344 = vrot.slane %v343, 2
    %v345 = vadd.f32 %v343, %v344
    %v346 = vrot.slane %v345, 1
    %v347 = vadd.f32 %v345, %v346
    %v348 = vsel %vm327, 0.0, %v309
    %v349 = vsel %vm328, 0.0, %v310
    %v350 = vsel %vm329, 0.0, %v311
    %v351 = vsel %vm330, 0.0, %v312
    %v352 = vsel %vm259, %v348, 0.0
    %v353 = vsel %vm259, %v349, 0.0
    %v354 = vadd.f32 %v352, %v353
    %v355 = vsel %vm259, %v350, 0.0
    %v356 = vadd.f32 %v354, %v355
    %v357 = vsel %vm259, %v351, 0.0
    %v358 = vadd.f32 %v356, %v357
    %v359 = vrot.slane %v358, 4
    %v360 = vadd.f32 %v358, %v359
    %v361 = vrot.slane %v360, 2
    %v362 = vadd.f32 %v360, %v361
    %v363 = vrot.slane %v362, 1
    %v364 = vadd.f32 %v362, %v363
    %v365 = vlog2.pop %v364
    %v366 = vmul.f32 %v365, 0.6931472
    %v367 = vlog2.pop %v347
    %v368 = vmul.f32 %v367, 0.6931472
    %v369 = vsub.f32 %v366, %v368
    %vm370 = vcmask 24576
    %371 = vst.msk [vmem:[#allocation6] sm:$0x1] %vm370, %v369
    // Predicated region
    $region22: #{tpu_custom_call.1} parent=1 // pred_check
      _
    $region23: #{tpu_custom_call.1} parent=1 // pred_check_branch
      %373 = sbr.rel (0) target = $region25
    $region24: #{tpu_custom_call.1} parent=1 // pred_region
      %s375 = ssub.s32 16, 16
      %376 = vsyncadd [#allocation5], %s375
      %s378 = sshll.u32 [#allocation6], 4
      %s379 = int_to_ptr.vmem [resolvable:$true] %s378
      %381 = dma.vmem_to_hbm [thread:$0]  %s379, 16, %s4, [#allocation5]
    $region25: #{tpu_custom_call.1} parent=1 // pred_fallthru
      _
    // Predicated region
    $region26: #{tpu_custom_call.1} parent=1 // pred_check
      _
    $region27: #{tpu_custom_call.1} parent=1 // pred_check_branch
      %383 = sbr.rel (0) target = $region29
    $region28: #{tpu_custom_call.1} parent=1 // pred_region
      %384 = dma.done [#allocation5], 16
    $region29: #{tpu_custom_call.1} parent=1 // pred_fallthru
      _
    %385 = vsyncpa [#allocation4], 1
    %386 = vsyncpa [#allocation5], 1

</llo_original>
